<compile_context>
chip_gen: v6e
topology: v6e:2x2x1
jax: 0.10.0
libtpu: 0.0.40
codegen_flags: <defaults>
</compile_context>

<pallas_src>
import jax
import jax.numpy as jnp
from jax.experimental import pallas as pl
from jax.experimental.pallas import tpu as pltpu


def _round_up(v: int, m: int) -> int:
    return (v + m - 1) // m * m


def _critic_kernel(x_ref, w1_ref, b1_ref, w2_ref, b2_ref, o_ref):
    # Cast x f32 -> bf16 on the VPU (free under the memory bound), MXU matmul
    # with f32 accumulation.
    x = x_ref[...].astype(jnp.bfloat16)
    h = jnp.dot(x, w1_ref[...], preferred_element_type=jnp.float32)
    h = h + b1_ref[...]                       # (TB, Hp) + (1, Hp), f32 on the VPU
    # LeakyReLU (PyTorch default negative_slope = 0.01), kept in f32.
    h = jnp.where(h > 0, h, 0.01 * h)
    # Output layer: bf16 operands on the MXU, f32 accumulation. W2/b2 are padded
    # to 128 lanes for the MXU, but only the real A columns are stored.
    out = jnp.dot(h.astype(jnp.bfloat16), w2_ref[...],
                  preferred_element_type=jnp.float32)
    out = out + b2_ref[...]
    o_ref[...] = out[:, : o_ref.shape[1]]     # unpadded (TB, A) f32 writeback


def prepare_critic_params(w1, b1, w2, b2):
    """One-time padding/cast of the (small) weights; do NOT call per forward.

    w1 : (num_observations, hidden_size)   -- transposed PyTorch weight
    b1 : (1, hidden_size) or (hidden_size,)
    w2 : (hidden_size, num_actions)        -- transposed PyTorch weight
    b2 : (1, num_actions) or (num_actions,)
    """
    K, H = w1.shape
    Hw, A = w2.shape
    assert H == Hw
    H_pad = _round_up(H, 128)
    A_pad = _round_up(A, 128)
    # Zero padding of hidden/output feature axes is a mathematical no-op.
    w1_p = jnp.pad(w1, ((0, 0), (0, H_pad - H))).astype(jnp.bfloat16)
    b1_p = jnp.pad(jnp.reshape(b1, (1, H)), ((0, 0), (0, H_pad - H))).astype(jnp.float32)
    w2_p = jnp.pad(w2, ((0, H_pad - H), (0, A_pad - A))).astype(jnp.bfloat16)
    b2_p = jnp.pad(jnp.reshape(b2, (1, A)), ((0, 0), (0, A_pad - A))).astype(jnp.float32)
    return {"w1": w1_p, "b1": b1_p, "w2": w2_p, "b2": b2_p,
            "num_obs": K, "hidden": H, "num_actions": A}


def critic_forward(x, params, *, block_batch: int = 1024):
    """Pallas forward pass of Critic.

    x : (B, num_observations) float32
    params : output of prepare_critic_params
    returns (B, num_actions) float32
    """
    B, K = x.shape
    assert K == params["num_obs"]
    A = params["num_actions"]
    w1_p, b1_p, w2_p, b2_p = params["w1"], params["b1"], params["w2"], params["b2"]
    H_pad = w1_p.shape[1]
    A_pad = w2_p.shape[1]

    # Batch tile: multiple of 8, capped at block_batch (double-buffered tiles at
    # TB=1024 are < 1 MiB -- far under scoped VMEM on v5e/v6e/v7x).  When B
    # allows, guarantee >= 2 grid steps so the ("parallel",) batch axis shards
    # across both v7x TensorCores.
    B8 = _round_up(B, 8)
    TB = min(block_batch, B8)
    if B8 >= 16:
        TB = min(TB, _round_up((B8 + 1) // 2, 8))
    B_pad = _round_up(B, TB)

    # Avoid the batch-padding round trip when it isn't needed.
    x_in = x if B_pad == B else jnp.pad(x, ((0, B_pad - B), (0, 0)))

    H = params["hidden"]
    cost = pl.CostEstimate(
        flops=2 * B_pad * K * H + 2 * B_pad * H * A,
        transcendentals=0,
        bytes_accessed=(x_in.size * 4 + w1_p.size * 2 + w2_p.size * 2
                        + b1_p.size * 4 + b2_p.size * 4 + B_pad * A * 4),
    )

    vmem = pltpu.MemorySpace.VMEM
    out = pl.pallas_call(
        _critic_kernel,
        out_shape=jax.ShapeDtypeStruct((B_pad, A), jnp.float32),
        grid=(B_pad // TB,),
        in_specs=[
            pl.BlockSpec((TB, K),        lambda i: (i, 0), memory_space=vmem),
            pl.BlockSpec((K, H_pad),     lambda i: (0, 0), memory_space=vmem),
            pl.BlockSpec((1, H_pad),     lambda i: (0, 0), memory_space=vmem),
            pl.BlockSpec((H_pad, A_pad), lambda i: (0, 0), memory_space=vmem),
            pl.BlockSpec((1, A_pad),     lambda i: (0, 0), memory_space=vmem),
        ],
        out_specs=pl.BlockSpec((TB, A), lambda i: (i, 0), memory_space=vmem),
        compiler_params=pltpu.CompilerParams(
            dimension_semantics=("parallel",)),
        cost_estimate=cost,
    )(x_in, w1_p, b1_p, w2_p, b2_p)

    return out if B_pad == B else out[:B]


def init_critic_params(key, num_observations, hidden_size, num_actions):
    """Deterministic init mirroring torch.nn.Linear (uniform +-1/sqrt(fan_in))."""
    k1, k2, k3, k4 = jax.random.split(key, 4)
    bound1 = 1.0 / jnp.sqrt(float(num_observations))
    bound2 = 1.0 / jnp.sqrt(float(hidden_size))
    # Stored as (in, out), i.e. the transpose of PyTorch's (out, in) layout.
    w1 = jax.random.uniform(k1, (num_observations, hidden_size), jnp.float32,
                            minval=-bound1, maxval=bound1)
    b1 = jax.random.uniform(k2, (1, hidden_size), jnp.float32,
                            minval=-bound1, maxval=bound1)
    w2 = jax.random.uniform(k3, (hidden_size, num_actions), jnp.float32,
                            minval=-bound2, maxval=bound2)
    b2 = jax.random.uniform(k4, (1, num_actions), jnp.float32,
                            minval=-bound2, maxval=bound2)
    return w1, b1, w2, b2


def critic_reference_f32(x, w1, b1, w2, b2):
    """Pure-JAX f32 reference (matches the PyTorch module semantics)."""
    h = x @ w1 + b1
    h = jnp.where(h > 0, h, 0.01 * h)
    return h @ w2 + b2


def critic_reference_bf16(x, w1, b1, w2, b2):
    """Pure-JAX reference with the same bf16-matmul / f32-accumulate recipe."""
    h = jnp.dot(x.astype(jnp.bfloat16), w1.astype(jnp.bfloat16),
                preferred_element_type=jnp.float32) + b1
    h = jnp.where(h > 0, h, 0.01 * h)
    return jnp.dot(h.astype(jnp.bfloat16), w2.astype(jnp.bfloat16),
                   preferred_element_type=jnp.float32) + b2


if __name__ == "__main__":
    num_observations = 32
    hidden_size = 64
    num_actions = 8
    batch = 8

    key = jax.random.PRNGKey(0)
    kx, kp = jax.random.split(key)
    x = jax.random.normal(kx, (batch, num_observations), jnp.float32)
    w1, b1, w2, b2 = init_critic_params(kp, num_observations, hidden_size, num_actions)

    params = prepare_critic_params(w1, b1, w2, b2)   # one-time weight prep

    out = critic_forward(x, params)
    out = jax.block_until_ready(out)

    ref_bf16 = critic_reference_bf16(x, w1, b1, w2, b2)
    ref_f32 = critic_reference_f32(x, w1, b1, w2, b2)

    assert out.shape == (batch, num_actions)
    assert jnp.allclose(out, ref_bf16, atol=1e-2, rtol=1e-2)   # same bf16 recipe
    assert jnp.allclose(out, ref_f32, atol=5e-2, rtol=5e-2)    # full-precision sanity

    # Also exercise a batch that forces >=2 grid steps and tail padding.
    x_big = jax.random.normal(kx, (300, num_observations), jnp.float32)
    out_big = jax.block_until_ready(critic_forward(x_big, params))
    assert out_big.shape == (300, num_actions)
    assert jnp.allclose(out_big, critic_reference_bf16(x_big, w1, b1, w2, b2),
                        atol=1e-2, rtol=1e-2)

    print("KERNEL_OK")
</pallas_src>

<mosaic_0001>
module attributes {stable_mosaic.version = 11 : i64} {
  func.func @_critic_kernel(%arg0: i32, %arg1: memref<8x32xf32, #tpu.memory_space<vmem>>, %arg2: memref<32x128xbf16, #tpu.memory_space<vmem>>, %arg3: memref<1x128xf32, #tpu.memory_space<vmem>>, %arg4: memref<128x128xbf16, #tpu.memory_space<vmem>>, %arg5: memref<1x128xf32, #tpu.memory_space<vmem>>, %arg6: memref<8x8xf32, #tpu.memory_space<vmem>>) attributes {dimension_semantics = [#tpu.dimension_semantics<parallel>], iteration_bounds = array<i64: 1>, scalar_prefetch = 0 : i64, scratch_operands = 0 : i64, tpu.core_type = #tpu.core_type<tc>, window_params = [{transform_indices = @transform_0, window_bounds = array<i64: 8, 32>}, {pipeline_mode = #tpu.pipeline_mode<synchronous>, transform_indices = @transform_1, window_bounds = array<i64: 32, 128>}, {pipeline_mode = #tpu.pipeline_mode<synchronous>, transform_indices = @transform_2, window_bounds = array<i64: 1, 128>}, {pipeline_mode = #tpu.pipeline_mode<synchronous>, transform_indices = @transform_3, window_bounds = array<i64: 128, 128>}, {pipeline_mode = #tpu.pipeline_mode<synchronous>, transform_indices = @transform_4, window_bounds = array<i64: 1, 128>}, {transform_indices = @transform_5, window_bounds = array<i64: 8, 8>}]} {
    %c0 = arith.constant 0 : index
    %c0_0 = arith.constant 0 : index
    %0 = vector.load %arg1[%c0, %c0_0] : memref<8x32xf32, #tpu.memory_space<vmem>>, vector<8x32xf32>
    %1 = arith.truncf %0 : vector<8x32xf32> to vector<8x32xbf16>
    %c0_1 = arith.constant 0 : index
    %c0_2 = arith.constant 0 : index
    %2 = vector.load %arg2[%c0_1, %c0_2] : memref<32x128xbf16, #tpu.memory_space<vmem>>, vector<32x128xbf16>
    %cst = arith.constant dense<0.000000e+00> : vector<8x128xf32>
    %3 = tpu.matmul %1, %2, %cst {dimension_numbers = #tpu.dot_dimension_numbers<[1], [0], [0], [1], [0, 0, 1, 1], [], []>} : vector<8x32xbf16>, vector<32x128xbf16>, vector<8x128xf32> -> vector<8x128xf32>
    %c0_3 = arith.constant 0 : index
    %c0_4 = arith.constant 0 : index
    %4 = vector.load %arg3[%c0_3, %c0_4] : memref<1x128xf32, #tpu.memory_space<vmem>>, vector<1x128xf32>
    %5 = vector.broadcast %4 : vector<1x128xf32> to vector<8x128xf32>
    %6 = arith.addf %3, %5 : vector<8x128xf32>
    %cst_5 = arith.constant 0.000000e+00 : f32
    %7 = vector.broadcast %cst_5 : f32 to vector<8x128xf32>
    %8 = arith.cmpf ogt, %6, %7 : vector<8x128xf32>
    %cst_6 = arith.constant 0.00999999977 : f32
    %9 = vector.broadcast %cst_6 : f32 to vector<8x128xf32>
    %10 = arith.mulf %9, %6 : vector<8x128xf32>
    %11 = arith.select %8, %6, %10 : vector<8x128xi1>, vector<8x128xf32>
    %12 = arith.truncf %11 : vector<8x128xf32> to vector<8x128xbf16>
    %c0_7 = arith.constant 0 : index
    %c0_8 = arith.constant 0 : index
    %13 = vector.load %arg4[%c0_7, %c0_8] : memref<128x128xbf16, #tpu.memory_space<vmem>>, vector<128x128xbf16>
    %cst_9 = arith.constant dense<0.000000e+00> : vector<8x128xf32>
    %14 = tpu.matmul %12, %13, %cst_9 {dimension_numbers = #tpu.dot_dimension_numbers<[1], [0], [0], [1], [0, 0, 1, 1], [], []>} : vector<8x128xbf16>, vector<128x128xbf16>, vector<8x128xf32> -> vector<8x128xf32>
    %c0_10 = arith.constant 0 : index
    %c0_11 = arith.constant 0 : index
    %15 = vector.load %arg5[%c0_10, %c0_11] : memref<1x128xf32, #tpu.memory_space<vmem>>, vector<1x128xf32>
    %16 = vector.broadcast %15 : vector<1x128xf32> to vector<8x128xf32>
    %17 = arith.addf %14, %16 : vector<8x128xf32>
    %18 = vector.extract_strided_slice %17 {offsets = [0, 0], sizes = [8, 8], strides = [1, 1]} : vector<8x128xf32> to vector<8x8xf32>
    %c0_12 = arith.constant 0 : index
    %c0_13 = arith.constant 0 : index
    %19 = vector.load %arg6[%c0_12, %c0_13] : memref<8x8xf32, #tpu.memory_space<vmem>>, vector<8x8xf32>
    tpu.vector_store %arg6[%c0_12, %c0_13], %18 {strides = array<i32>} : memref<8x8xf32, #tpu.memory_space<vmem>>, vector<8x8xf32>,
    return
  }
  func.func @transform_0(%arg0: i32) -> (i32, i32) {
    %c0_i32 = arith.constant 0 : i32
    %c0_i32_0 = arith.constant 0 : i32
    return %arg0, %c0_i32 : i32, i32
  }
  func.func @transform_1(%arg0: i32) -> (i32, i32) {
    %c0_i32 = arith.constant 0 : i32
    %c0_i32_0 = arith.constant 0 : i32
    %c0_i32_1 = arith.constant 0 : i32
    return %c0_i32, %c0_i32_0 : i32, i32
  }
  func.func @transform_2(%arg0: i32) -> (i32, i32) {
    %c0_i32 = arith.constant 0 : i32
    %c0_i32_0 = arith.constant 0 : i32
    %c0_i32_1 = arith.constant 0 : i32
    return %c0_i32, %c0_i32_0 : i32, i32
  }
  func.func @transform_3(%arg0: i32) -> (i32, i32) {
    %c0_i32 = arith.constant 0 : i32
    %c0_i32_0 = arith.constant 0 : i32
    %c0_i32_1 = arith.constant 0 : i32
    return %c0_i32, %c0_i32_0 : i32, i32
  }
  func.func @transform_4(%arg0: i32) -> (i32, i32) {
    %c0_i32 = arith.constant 0 : i32
    %c0_i32_0 = arith.constant 0 : i32
    %c0_i32_1 = arith.constant 0 : i32
    return %c0_i32, %c0_i32_0 : i32, i32
  }
  func.func @transform_5(%arg0: i32) -> (i32, i32) {
    %c0_i32 = arith.constant 0 : i32
    %c0_i32_0 = arith.constant 0 : i32
    return %arg0, %c0_i32 : i32, i32
  }
}

</mosaic_0001>

<llo_original>
// kernel: tpu_custom_call.1
$region0: #{tpu_custom_call.1}
  #allocation0 [shape = 'u32[]', space=smem, size = 0x4, offset = 0x4, fixed_abs, tag = 'smem constant byte address 0x4 - core index']
  #allocation1 [shape = 'u32[144,128]{1,0:T(1,128)}', space=vmem, size = 0x12000, scoped, tag = 'internal scratch']
  %s0 = inlined_call_operand.hbm [shape: f32[8,32], index: 0, kind: input, shape index: {}]
  %s1 = inlined_call_operand.hbm [shape: bf16[32,128], index: 1, kind: input, shape index: {}]
  %s2 = inlined_call_operand.vmem [shape: f32[1,128], index: 2, kind: input, shape index: {}]
  %s3 = inlined_call_operand.hbm [shape: bf16[128,128], index: 3, kind: input, shape index: {}]
  %s4 = inlined_call_operand.vmem [shape: f32[1,128], index: 4, kind: input, shape index: {}]
  %s5 = inlined_call_operand.hbm [shape: f32[8,8], index: 5, kind: output, shape index: {}]
  %s6 = sld [smem:[#allocation0]]
  $region42: #{tpu_custom_call.1} parent=0
    _
  %s8 = ssub.s32 1, %s6
  %s9 = scalar_select 0, %s8, %s6
  $region1: #{tpu_custom_call.1} parent=0
    #allocation2 [shape = 'u8[4096]{0}', space=vmem, size = 0x1000, scoped, tag = 'input window, operand 0, single buffered']
    #allocation3 [shape = 's32[1]{0}', space=sflag, size = 0x4, scoped, tag = 'scoped memory for tpu_custom_call.1']
    #allocation4 [shape = 's32[1]{0}', space=sflag, size = 0x4, scoped, tag = 'scoped memory for tpu_custom_call.1']
    #allocation5 [shape = 'u8[8192]{0}', space=vmem, size = 0x2000, scoped, tag = 'input window, operand 1, single buffered']
    #allocation6 [shape = 's32[1]{0}', space=sflag, size = 0x4, scoped, tag = 'scoped memory for tpu_custom_call.1']
    #allocation7 [shape = 'u8[32768]{0}', space=vmem, size = 0x8000, scoped, tag = 'input window, operand 3, single buffered']
    #allocation8 [shape = 'u8[4096]{0}', space=vmem, size = 0x1000, scoped, tag = 'output window, operand 0, single buffered']
    %10 = vsyncpa [#allocation3], 0
    %11 = vsyncpa [#allocation6], 0
    %12 = vsyncpa [#allocation4], 0
    // Predicated region
    $region2: #{tpu_custom_call.1} parent=1 // pred_check
      _
    $region3: #{tpu_custom_call.1} parent=1 // pred_check_branch
      %14 = sbr.rel (0) target = $region5
    $region4: #{tpu_custom_call.1} parent=1 // pred_region
      %s16 = ssub.s32 128, 128
      %17 = vsyncadd [#allocation3], %s16
      %s19 = sshll.u32 [#allocation2], 4
      %s20 = int_to_ptr.vmem [resolvable:$true] %s19
      %22 = dma.hbm_to_vmem [thread:$0]  %s0, 128, %s20, [#allocation3]
    $region5: #{tpu_custom_call.1} parent=1 // pred_fallthru
      _
    // Predicated region
    $region6: #{tpu_custom_call.1} parent=1 // pred_check
      _
    $region7: #{tpu_custom_call.1} parent=1 // pred_check_branch
      %24 = sbr.rel (0) target = $region9
    $region8: #{tpu_custom_call.1} parent=1 // pred_region
      %s26 = ssub.s32 256, 256
      %27 = vsyncadd [#allocation6], %s26
      %s28 = sshll.u32 [#allocation5], 4
      %s29 = int_to_ptr.vmem [resolvable:$true] %s28
      %34 = dma.hbm_to_vmem [thread:$0]  %s1, 256, %s29, [#allocation6], 64, 64, 4
    $region9: #{tpu_custom_call.1} parent=1 // pred_fallthru
      _
    // Predicated region
    $region10: #{tpu_custom_call.1} parent=1 // pred_check
      _
    $region11: #{tpu_custom_call.1} parent=1 // pred_check_branch
      %36 = sbr.rel (0) target = $region13
    $region12: #{tpu_custom_call.1} parent=1 // pred_region
      _
    $region13: #{tpu_custom_call.1} parent=1 // pred_fallthru
      _
    // Predicated region
    $region14: #{tpu_custom_call.1} parent=1 // pred_check
      _
    $region15: #{tpu_custom_call.1} parent=1 // pred_check_branch
      %38 = sbr.rel (0) target = $region17
    $region16: #{tpu_custom_call.1} parent=1 // pred_region
      %s40 = ssub.s32 1024, 1024
      %41 = vsyncadd [#allocation6], %s40
      %s42 = sshll.u32 [#allocation7], 4
      %s43 = int_to_ptr.vmem [resolvable:$true] %s42
      %48 = dma.hbm_to_vmem [thread:$0]  %s3, 1024, %s43, [#allocation6], 64, 64, 4
    $region17: #{tpu_custom_call.1} parent=1 // pred_fallthru
      _
    // Predicated region
    $region18: #{tpu_custom_call.1} parent=1 // pred_check
      _
    $region19: #{tpu_custom_call.1} parent=1 // pred_check_branch
      %50 = sbr.rel (0) target = $region21
    $region20: #{tpu_custom_call.1} parent=1 // pred_region
      _
    $region21: #{tpu_custom_call.1} parent=1 // pred_fallthru
      _
    // Predicated region
    $region22: #{tpu_custom_call.1} parent=1 // pred_check
      _
    $region23: #{tpu_custom_call.1} parent=1 // pred_check_branch
      %52 = sbr.rel (0) target = $region25
    $region24: #{tpu_custom_call.1} parent=1 // pred_region
      %53 = dma.done [#allocation3], 128
    $region25: #{tpu_custom_call.1} parent=1 // pred_fallthru
      _
    // Predicated region
    $region26: #{tpu_custom_call.1} parent=1 // pred_check
      _
    $region27: #{tpu_custom_call.1} parent=1 // pred_check_branch
      %55 = sbr.rel (0) target = $region29
    $region28: #{tpu_custom_call.1} parent=1 // pred_region
      %56 = dma.done [#allocation6], 256
    $region29: #{tpu_custom_call.1} parent=1 // pred_fallthru
      _
    // Predicated region
    $region30: #{tpu_custom_call.1} parent=1 // pred_check
      _
    $region31: #{tpu_custom_call.1} parent=1 // pred_check_branch
      %58 = sbr.rel (0) target = $region33
    $region32: #{tpu_custom_call.1} parent=1 // pred_region
      %59 = dma.done [#allocation6], 1024
    $region33: #{tpu_custom_call.1} parent=1 // pred_fallthru
      _
    %v61 = vld [vmem:[#allocation2] sm:$0xff]
    %v62 = vpack.c.bf16 %v61, %v61
    %v63 = vld [vmem:[#allocation5] sm:$0xf]
    %v64 = vld [vmem:[#allocation5 + $0x4] sm:$0xf]
    %v65 = vld [vmem:[#allocation5 + $0x8] sm:$0xf]
    %v66 = vld [vmem:[#allocation5 + $0xc] sm:$0xf]
    %v67 = vld [vmem:[%s2] sm:$0x1]
    %v69 = vlaneseq
    %v70 = vshrl.u32 %v69, 7
    %v71 = vsub.s32 0, %v70
    %v72 = vrot.slane %v67, %v71
    %v78 = vunpack.c.l.b16 %v63
    %v79 = vunpack.c.l.b16 %v64
    %v80 = vunpack.c.l.b16 %v65
    %v81 = vunpack.c.l.b16 %v66
    %v82 = vpack.c.b16 %v79, %v78
    %v83 = vpack.c.b16 %v81, %v80
    %vm86 = vcmask 261120
    %v88 = vsel %vm86, %v62, 0
    %90 = vmatprep.subr.bf16.mxu0 0
    %91 = vmatpush1.bf16.msra.mxu0 0
    %92 = vmatprep.subr.bf16.mxu0 0
    %93 = vmatpush1.bf16.msra.mxu0 0
    %94 = vmatprep.subr.bf16.mxu0 0
    %95 = vmatpush1.bf16.msra.mxu0 0
    %96 = vmatprep.subr.bf16.mxu0 0
    %97 = vmatpush1.bf16.msra.mxu0 0
    %98 = vmatprep.subr.bf16.mxu0 0
    %99 = vmatpush1.bf16.msra.mxu0 0
    %100 = vmatprep.subr.bf16.mxu0 0
    %101 = vmatpush1.bf16.msra.mxu0 0
    %102 = vmatprep.subr.bf16.mxu0 0
    %103 = vmatpush1.bf16.msra.mxu0 %v83
    %104 = vmatprep.subr.bf16.mxu0 0
    %105 = vmatpush1.bf16.msra.mxu0 %v82
    %106 = vmatprep.subr.bf16.mxu0 0
    %107 = vmatpush2.bf16.msra.mxu0 0
    %108 = vmatprep.subr.bf16.mxu0 0
    %109 = vmatpush2.bf16.msra.mxu0 0
    %110 = vmatprep.subr.bf16.mxu0 0
    %111 = vmatpush2.bf16.msra.mxu0 0
    %112 = vmatprep.subr.bf16.mxu0 0
    %113 = vmatpush2.bf16.msra.mxu0 0
    %114 = vmatprep.subr.bf16.mxu0 0
    %115 = vmatpush2.bf16.msra.mxu0 0
    %116 = vmatprep.subr.bf16.mxu0 0
    %117 = vmatpush2.bf16.msra.mxu0 0
    %118 = vmatprep.subr.bf16.mxu0 0
    %119 = vmatpush2.bf16.msra.mxu0 0
    %120 = vmatprep.subr.bf16.mxu0 0
    %121 = vmatpush2.bf16.msra.mxu0 0
    %122 = vmatprep.mubr.bf16.mxu0 0
    %123 = vmatmul.mubr.bf16.gmra.mxu0 %v88
    %v124 = vpop.f32.mrf.mxu0
    %v125 = vadd.f32 %v72, %v124
    %v126 = vpop.f32.mrf.mxu0
    %v127 = vpop.f32.mrf.mxu0
    %v128 = vpop.f32.mrf.mxu0
    %129 = vdwg.mxu0
    %vm130 = vcmp.gt.f32.partialorder %v125, 0.0
    %v131 = vmul.f32 %v125, 0.01
    %v132 = vsel %vm130, %v125, %v131
    %v133 = vpack.c.bf16 %v132, %v132
    %v134 = vld [vmem:[#allocation7] sm:$0xf]
    %v135 = vld [vmem:[#allocation7 + $0x4] sm:$0xf]
    %v136 = vld [vmem:[#allocation7 + $0x8] sm:$0xf]
    %v137 = vld [vmem:[#allocation7 + $0xc] sm:$0xf]
    %v138 = vld [vmem:[#allocation7 + $0x10] sm:$0xf]
    %v139 = vld [vmem:[#allocation7 + $0x14] sm:$0xf]
    %v140 = vld [vmem:[#allocation7 + $0x18] sm:$0xf]
    %v141 = vld [vmem:[#allocation7 + $0x1c] sm:$0xf]
    %v142 = vld [vmem:[#allocation7 + $0x20] sm:$0xf]
    %v143 = vld [vmem:[#allocation7 + $0x24] sm:$0xf]
    %v144 = vld [vmem:[#allocation7 + $0x28] sm:$0xf]
    %v145 = vld [vmem:[#allocation7 + $0x2c] sm:$0xf]
    %v146 = vld [vmem:[#allocation7 + $0x30] sm:$0xf]
    %v147 = vld [vmem:[#allocation7 + $0x34] sm:$0xf]
    %v148 = vld [vmem:[#allocation7 + $0x38] sm:$0xf]
    %v149 = vld [vmem:[#allocation7 + $0x3c] sm:$0xf]
    %v150 = vld [vmem:[%s4] sm:$0x1]
    %v152 = vlaneseq
    %v153 = vshrl.u32 %v152, 7
    %v154 = vsub.s32 0, %v153
    %v155 = vrot.slane %v150, %v154
    %v173 = vunpack.c.l.b16 %v134
    %v174 = vunpack.c.l.b16 %v135
    %v175 = vunpack.c.l.b16 %v136
    %v176 = vunpack.c.l.b16 %v137
    %v177 = vunpack.c.l.b16 %v138
    %v178 = vunpack.c.l.b16 %v139
    %v179 = vunpack.c.l.b16 %v140
    %v180 = vunpack.c.l.b16 %v141
    %v181 = vunpack.c.l.b16 %v142
    %v182 = vunpack.c.l.b16 %v143
    %v183 = vunpack.c.l.b16 %v144
    %v184 = vunpack.c.l.b16 %v145
    %v185 = vunpack.c.l.b16 %v146
    %v186 = vunpack.c.l.b16 %v147
    %v187 = vunpack.c.l.b16 %v148
    %v188 = vunpack.c.l.b16 %v149
    %v189 = vpack.c.b16 %v174, %v173
    %v190 = vpack.c.b16 %v176, %v175
    %v191 = vpack.c.b16 %v178, %v177
    %v192 = vpack.c.b16 %v180, %v179
    %v193 = vpack.c.b16 %v182, %v181
    %v194 = vpack.c.b16 %v184, %v183
    %v195 = vpack.c.b16 %v186, %v185
    %v196 = vpack.c.b16 %v188, %v187
    %205 = vmatprep.subr.bf16.mxu0 0
    %206 = vmatpush1.bf16.msra.mxu0 %v196
    %207 = vmatprep.subr.bf16.mxu0 0
    %208 = vmatpush1.bf16.msra.mxu0 %v195
    %209 = vmatprep.subr.bf16.mxu0 0
    %210 = vmatpush1.bf16.msra.mxu0 %v194
    %211 = vmatprep.subr.bf16.mxu0 0
    %212 = vmatpush1.bf16.msra.mxu0 %v193
    %213 = vmatprep.subr.bf16.mxu0 0
    %214 = vmatpush1.bf16.msra.mxu0 %v192
    %215 = vmatprep.subr.bf16.mxu0 0
    %216 = vmatpush1.bf16.msra.mxu0 %v191
    %217 = vmatprep.subr.bf16.mxu0 0
    %218 = vmatpush1.bf16.msra.mxu0 %v190
    %219 = vmatprep.subr.bf16.mxu0 0
    %220 = vmatpush1.bf16.msra.mxu0 %v189
    %221 = vmatprep.subr.bf16.mxu0 0
    %222 = vmatpush2.bf16.msra.mxu0 0
    %223 = vmatprep.subr.bf16.mxu0 0
    %224 = vmatpush2.bf16.msra.mxu0 0
    %225 = vmatprep.subr.bf16.mxu0 0
    %226 = vmatpush2.bf16.msra.mxu0 0
    %227 = vmatprep.subr.bf16.mxu0 0
    %228 = vmatpush2.bf16.msra.mxu0 0
    %229 = vmatprep.subr.bf16.mxu0 0
    %230 = vmatpush2.bf16.msra.mxu0 0
    %231 = vmatprep.subr.bf16.mxu0 0
    %232 = vmatpush2.bf16.msra.mxu0 0
    %233 = vmatprep.subr.bf16.mxu0 0
    %234 = vmatpush2.bf16.msra.mxu0 0
    %235 = vmatprep.subr.bf16.mxu0 0
    %236 = vmatpush2.bf16.msra.mxu0 0
    %237 = vmatprep.mubr.bf16.mxu0 0
    %238 = vmatmul.mubr.bf16.gmra.mxu0 %v133
    %v239 = vpop.f32.mrf.mxu0
    %v240 = vadd.f32 %v155, %v239
    %v241 = vpop.f32.mrf.mxu0
    %v242 = vpop.f32.mrf.mxu0
    %v243 = vpop.f32.mrf.mxu0
    %244 = vdwg.mxu0
    %vm245 = vcmask 64512
    %246 = vst.msk [vmem:[#allocation8] sm:$0xff] %vm245, %v240
    // Predicated region
    $region34: #{tpu_custom_call.1} parent=1 // pred_check
      _
    $region35: #{tpu_custom_call.1} parent=1 // pred_check_branch
      %248 = sbr.rel (0) target = $region37
    $region36: #{tpu_custom_call.1} parent=1 // pred_region
      %s250 = ssub.s32 128, 128
      %251 = vsyncadd [#allocation4], %s250
      %s253 = sshll.u32 [#allocation8], 4
      %s254 = int_to_ptr.vmem [resolvable:$true] %s253
      %256 = dma.vmem_to_hbm [thread:$0]  %s254, 128, %s5, [#allocation4]
    $region37: #{tpu_custom_call.1} parent=1 // pred_fallthru
      _
    // Predicated region
    $region38: #{tpu_custom_call.1} parent=1 // pred_check
      _
    $region39: #{tpu_custom_call.1} parent=1 // pred_check_branch
      %258 = sbr.rel (0) target = $region41
    $region40: #{tpu_custom_call.1} parent=1 // pred_region
      %259 = dma.done [#allocation4], 128
    $region41: #{tpu_custom_call.1} parent=1 // pred_fallthru
      _
    %260 = vsyncpa [#allocation3], 1
    %261 = vsyncpa [#allocation6], 1
    %262 = vsyncpa [#allocation4], 1

</llo_original>
